<compile_context>
chip_gen: v6e
topology: v6e:2x2x1
jax: 0.10.0
libtpu: 0.0.40
codegen_flags: <defaults>
</compile_context>

<pallas_src>
import functools

import jax
import jax.numpy as jnp
from jax import lax
from jax.experimental import pallas as pl
from jax.experimental.pallas import tpu as pltpu

BN_EPS = 1e-5


def _vmem_budget():
    """Generation-aware VMEM numbers (~75% scoped limit / ~55% tiling budget)."""
    cap = 64 * 1024 * 1024                      # conservative default (v7x-sized)
    try:
        cap = int(pltpu.get_tpu_info().vmem_capacity_bytes)
    except Exception:
        pass
    return int(cap * 3 // 4), int(cap * 11 // 20)


# --------------------------------------------------------------------------- #
# Pass 1 kernel: sub-pixel deconv matmul + BatchNorm partial statistics
# --------------------------------------------------------------------------- #
def _deconv_stats_kernel(xm_ref, xn_ref, w_ref, y_ref, sum_ref, ssq_ref):
    th = xm_ref.shape[1]
    wp1 = xm_ref.shape[2]
    cin = xm_ref.shape[3]
    ww = wp1 - 1
    np_ = w_ref.shape[1]

    # (TH+1, W+1, Cin) window assembled in VMEM from the TH-row block + 1 halo row.
    xw = jnp.concatenate([xm_ref[0], xn_ref[0]], axis=0)
    # 4 shifted taps -> (TH*W, 4*Cin) patch tile, built in VMEM (never in HBM).
    taps = [xw[dy:dy + th, dx:dx + ww, :] for dy in (0, 1) for dx in (0, 1)]
    patches = jnp.concatenate(taps, axis=-1).reshape(th * ww, 4 * cin)

    # One MXU matmul does the whole k=3/s=2/p=1/op=1 transposed conv for this tile.
    y = jnp.dot(patches, w_ref[...], preferred_element_type=jnp.float32)  # (TH*W, 4*Cout) f32
    y_ref[...] = y.astype(y_ref.dtype).reshape(1, th, ww, np_)

    # BN partial sums from the f32 accumulator, reduced on the MXU
    # (ones-vector matmuls) instead of cross-sublane VPU reductions.
    ones = jnp.ones((1, th * ww), jnp.float32)
    sum_ref[...] = jnp.dot(ones, y, preferred_element_type=jnp.float32).reshape(1, 1, 1, np_)
    ssq_ref[...] = jnp.dot(ones, y * y, preferred_element_type=jnp.float32).reshape(1, 1, 1, np_)


# --------------------------------------------------------------------------- #
# Weight / tiling helpers
# --------------------------------------------------------------------------- #
def _build_deconv_weight(w_ct):
    """ConvTranspose2d(k=3,s=2,p=1,op=1) weight (Cin,Cout,3,3) -> block matrix.

    Rows: 4 input taps   (dy,dx) in {(0,0),(0,1),(1,0),(1,1)}  x Cin
    Cols: 4 output parities (py,px) in the same order          x Cout
    out[2m+py, 2l+px, co] = sum_{dy,dx} x[m+dy, l+dx, :] @ W_block[(dy,dx), (py,px)]
    """
    cin, cout = w_ct.shape[0], w_ct.shape[1]
    zero = jnp.zeros((cin, cout), w_ct.dtype)

    def kidx(d, p):  # kernel-tap index that feeds parity p from input shift d
        if p == 0:
            return 1 if d == 0 else None
        return 2 if d == 0 else 0

    rows = []
    for dy in (0, 1):
        for dx in (0, 1):
            cols = []
            for py in (0, 1):
                for px in (0, 1):
                    ky, kx = kidx(dy, py), kidx(dx, px)
                    cols.append(zero if (ky is None or kx is None)
                                else w_ct[:, :, ky, kx])
            rows.append(jnp.concatenate(cols, axis=1))        # (Cin, 4*Cout)
    return jnp.concatenate(rows, axis=0)                      # (4*Cin, 4*Cout)


def _pick_tile_h(n, h, w, cin, np_, budget):
    """Largest row-tile whose per-step working set fits the VMEM budget."""
    row_x = (w + 1) * cin * 2                 # one bf16 input window row
    row_y = w * np_ * 2                       # one bf16 y output row
    per_row = (2 * row_x                      # input block, double-buffered
               + row_x                        # window concat temp
               + w * 4 * cin * 2              # patch temp
               + 2 * row_y                    # y output, double-buffered
               + 2 * w * np_ * 4)             # f32 accumulator + y*y temp
    fixed = 2 * (4 * cin * np_ * 2) + 4 * row_x + (1 << 20)   # weight (dbl-buf) + halo + slack
    th = max(1, (budget - fixed) // per_row)
    th = int(min(th, h))
    # Make sure the "parallel" grid has >= 2 steps (v7x: use both TensorCores).
    if n * pl.cdiv(h, th) < 2 and h >= 2:
        th = pl.cdiv(h, 2)
    return max(1, int(th))


# --------------------------------------------------------------------------- #
# Forward
# --------------------------------------------------------------------------- #
@functools.partial(jax.jit, static_argnames=("tile_h",))
def up_forward(x_nchw, w_ct, conv_bias, gamma, beta, *, tile_h=None):
    """Forward of Up. x: (N,Cin,H,W), w_ct: (Cin,Cout,3,3). Returns (N,Cout,2H,2W)."""
    n, cin, h, w = x_nchw.shape
    cout = w_ct.shape[1]
    oh, ow = 2 * h, 2 * w
    k4, np_ = 4 * cin, 4 * cout

    vmem_limit, budget = _vmem_budget()
    if tile_h is None:
        tile_h = _pick_tile_h(n, h, w, cin, np_, budget)
    tile_h = int(min(tile_h, h))
    h_tiles = pl.cdiv(h, tile_h)
    h_pad = h_tiles * tile_h

    # NCHW -> NHWC once (input is the smallest tensor in the pipeline); the output
    # side layout change is fused into the XLA epilogue, not a standalone transpose.
    x_nhwc = jnp.transpose(x_nchw, (0, 2, 3, 1)).astype(jnp.bfloat16)
    # +1 zero halo row/col (p=1/op=1 semantics) + bottom pad to a multiple of tile_h.
    x_pad = jnp.pad(x_nhwc, ((0, 0), (0, h_pad + 1 - h), (0, 1), (0, 0)))

    # (4*Cin, 4*Cout) sub-pixel block weight.  Kept unpadded: block == full array
    # dims is legal and avoids inflating traffic for small channel counts.
    w_block = _build_deconv_weight(w_ct.astype(jnp.float32)).astype(jnp.bfloat16)

    # ConvTranspose2d bias cancels exactly under training-mode BatchNorm centering.
    # TODO(synk): if norm_layer were Identity / eval-mode BN, add conv_bias in-kernel.
    del conv_bias

    cost = pl.CostEstimate(
        flops=2 * n * h_pad * w * k4 * np_ + 4 * n * h_pad * w * np_,
        transcendentals=0,
        bytes_accessed=(x_pad.size * 2 + w_block.size * 2
                        + n * h_pad * w * np_ * 2 + 2 * n * h_tiles * np_ * 4))

    # ---- pass 1: tiled MXU deconv matmul + per-tile BN partial sums ---------
    y, psum, pssq = pl.pallas_call(
        _deconv_stats_kernel,
        out_shape=(
            jax.ShapeDtypeStruct((n, h_pad, w, np_), jnp.bfloat16),
            jax.ShapeDtypeStruct((n, h_tiles, 1, np_), jnp.float32),
            jax.ShapeDtypeStruct((n, h_tiles, 1, np_), jnp.float32),
        ),
        grid=(n, h_tiles),
        in_specs=[
            # TH-row block of the padded input ...
            pl.BlockSpec((1, tile_h, w + 1, cin), lambda b, i: (b, i, 0, 0)),
            # ... plus the single halo row below it (same HBM array, second operand).
            pl.BlockSpec((1, 1, w + 1, cin),
                         lambda b, i: (b, (i + 1) * tile_h, 0, 0)),
            # Grid-invariant block weight.
            # TODO(synk): on v7x, pipeline_mode=pl.Buffered(1) here would stop
            # double-buffering this invariant weight and free ~4*Cin*4*Cout*2 bytes.
            pl.BlockSpec((k4, np_), lambda b, i: (0, 0)),
        ],
        out_specs=(
            pl.BlockSpec((1, tile_h, w, np_), lambda b, i: (b, i, 0, 0)),
            pl.BlockSpec((1, 1, 1, np_), lambda b, i: (b, i, 0, 0)),
            pl.BlockSpec((1, 1, 1, np_), lambda b, i: (b, i, 0, 0)),
        ),
        compiler_params=pltpu.CompilerParams(
            dimension_semantics=("parallel", "parallel"),
            vmem_limit_bytes=vmem_limit),
        cost_estimate=cost,
    )(x_pad, x_pad, w_block)

    # ---- BatchNorm statistics finalize (tiny JAX glue) ----------------------
    col_sum = jnp.sum(psum, axis=(0, 1, 2))                 # (4*Cout,)
    col_ssq = jnp.sum(pssq, axis=(0, 1, 2))
    ch_sum = col_sum.reshape(4, cout).sum(axis=0)           # merge the 4 parity sub-images
    ch_ssq = col_ssq.reshape(4, cout).sum(axis=0)
    count = jnp.float32(n * oh * ow)                        # zero-padded rows contribute 0
    mean = ch_sum / count
    # TODO(synk): E[x^2]-E[x]^2 in f32 can cancel if |mean| >> std; a shifted /
    # Welford-style combine would be more robust for extreme activation scales.
    var = jnp.maximum(ch_ssq / count - mean * mean, 0.0)
    inv_std = lax.rsqrt(var + BN_EPS)
    scale_c = gamma.astype(jnp.float32) * inv_std
    shift_c = beta.astype(jnp.float32) - mean * scale_c
    scale_cols = jnp.tile(scale_c, 4)                       # (4*Cout,)
    shift_cols = jnp.tile(shift_c, 4)

    # ---- epilogue: BN apply + ReLU + pixel shuffle + NCHW in ONE fused XLA pass
    yr = y[:, :h, :, :].astype(jnp.float32)                 # strip tile padding
    z = jnp.maximum(yr * scale_cols + shift_cols, 0.0)      # (N,H,W,4*Cout)
    z = z.reshape(n, h, w, 2, 2, cout)                      # (N,H,W,py,px,C)
    out = jnp.transpose(z, (0, 5, 1, 3, 2, 4)).reshape(n, cout, oh, ow)
    return out


# --------------------------------------------------------------------------- #
# Pure-JAX reference: ConvTranspose2d(3, s=2, p=1, op=1) -> BN(batch stats) -> ReLU
# --------------------------------------------------------------------------- #
def _reference(x_nchw, w_ct, conv_bias, gamma, beta):
    # transposed conv == lhs-dilated conv with channel-swapped, spatially-flipped kernel
    w_conv = jnp.flip(jnp.transpose(w_ct, (1, 0, 2, 3)), axis=(2, 3))   # (Cout,Cin,3,3)
    y = lax.conv_general_dilated(
        x_nchw.astype(jnp.float32), w_conv.astype(jnp.float32),
        window_strides=(1, 1), padding=((1, 2), (1, 2)), lhs_dilation=(2, 2),
        dimension_numbers=("NCHW", "OIHW", "NCHW"))
    y = y + conv_bias.reshape(1, -1, 1, 1)
    mean = jnp.mean(y, axis=(0, 2, 3), keepdims=True)
    var = jnp.mean((y - mean) ** 2, axis=(0, 2, 3), keepdims=True)
    y = (y - mean) * lax.rsqrt(var + BN_EPS)
    y = y * gamma.reshape(1, -1, 1, 1) + beta.reshape(1, -1, 1, 1)
    return jnp.maximum(y, 0.0)


if __name__ == "__main__":
    # Small deterministic example: batch=2, in_ch=4, out_ch=8, spatial=16x16 -> 32x32.
    N, IN_CH, OUT_CH, H, W = 2, 4, 8, 16, 16
    USE_BIAS = False  # typical when norm_layer is BatchNorm2d

    key = jax.random.PRNGKey(0)
    kx, kw, kb = jax.random.split(key, 3)

    x = jax.random.normal(kx, (N, IN_CH, H, W), dtype=jnp.float32)
    # ConvTranspose2d weight layout (in_ch, out_ch, kH, kW); pix2pix-style N(0, 0.02) init.
    w = 0.02 * jax.random.normal(kw, (IN_CH, OUT_CH, 3, 3), dtype=jnp.float32)
    conv_bias = (0.02 * jax.random.normal(kb, (OUT_CH,), dtype=jnp.float32)
                 if USE_BIAS else jnp.zeros((OUT_CH,), dtype=jnp.float32))
    gamma = jnp.ones((OUT_CH,), dtype=jnp.float32)   # BN affine weight (PyTorch default)
    beta = jnp.zeros((OUT_CH,), dtype=jnp.float32)   # BN affine bias (PyTorch default)

    # tile_h=8 forces a 2x2 grid, exercising the halo row path and the
    # cross-tile BatchNorm partial-sum reduction.
    out = jax.block_until_ready(up_forward(x, w, conv_bias, gamma, beta, tile_h=8))

    # Reference uses the same bf16 rounding of x / w that the MXU path applies;
    # tolerance also covers the bf16 `y` intermediate of the Pallas pipeline.
    x_r = x.astype(jnp.bfloat16).astype(jnp.float32)
    w_r = w.astype(jnp.bfloat16).astype(jnp.float32)
    ref = jax.block_until_ready(_reference(x_r, w_r, conv_bias, gamma, beta))

    assert out.shape == (N, OUT_CH, 2 * H, 2 * W), out.shape
    max_err = float(jnp.max(jnp.abs(out - ref)))
    assert jnp.allclose(out, ref, atol=1e-2, rtol=1e-2), max_err

    print("KERNEL_OK")
</pallas_src>

<mosaic_0001>
module attributes {stable_mosaic.version = 11 : i64} {
  func.func @_deconv_stats_kernel(%arg0: i32, %arg1: i32, %arg2: memref<1x8x17x4xbf16, #tpu.memory_space<vmem>>, %arg3: memref<1x1x17x4xbf16, #tpu.memory_space<vmem>>, %arg4: memref<16x32xbf16, #tpu.memory_space<vmem>>, %arg5: memref<1x8x16x32xbf16, #tpu.memory_space<vmem>>, %arg6: memref<1x1x1x32xf32, #tpu.memory_space<vmem>>, %arg7: memref<1x1x1x32xf32, #tpu.memory_space<vmem>>) attributes {dimension_semantics = [#tpu.dimension_semantics<parallel>, #tpu.dimension_semantics<parallel>], iteration_bounds = array<i64: 2, 2>, scalar_prefetch = 0 : i64, scratch_operands = 0 : i64, tpu.core_type = #tpu.core_type<tc>, window_params = [{transform_indices = @transform_0, window_bounds = array<i64: 1, 8, 17, 4>}, {transform_indices = @transform_1, window_bounds = array<i64: 1, 1, 17, 4>}, {pipeline_mode = #tpu.pipeline_mode<synchronous>, transform_indices = @transform_2, window_bounds = array<i64: 16, 32>}, {transform_indices = @transform_3, window_bounds = array<i64: 1, 8, 16, 32>}, {transform_indices = @transform_4, window_bounds = array<i64: 1, 1, 1, 32>}, {transform_indices = @transform_5, window_bounds = array<i64: 1, 1, 1, 32>}]} {
    %c0 = arith.constant 0 : index
    %c0_0 = arith.constant 0 : index
    %c0_1 = arith.constant 0 : index
    %c0_2 = arith.constant 0 : index
    %0 = vector.load %arg2[%c0, %c0_0, %c0_1, %c0_2] : memref<1x8x17x4xbf16, #tpu.memory_space<vmem>>, vector<1x8x17x4xbf16>
    %1 = vector.shape_cast %0 : vector<1x8x17x4xbf16> to vector<8x17x4xbf16>
    %c0_3 = arith.constant 0 : index
    %c0_4 = arith.constant 0 : index
    %c0_5 = arith.constant 0 : index
    %c0_6 = arith.constant 0 : index
    %2 = vector.load %arg3[%c0_3, %c0_4, %c0_5, %c0_6] : memref<1x1x17x4xbf16, #tpu.memory_space<vmem>>, vector<1x1x17x4xbf16>
    %3 = vector.shape_cast %2 : vector<1x1x17x4xbf16> to vector<1x17x4xbf16>
    %4 = tpu.concatenate %1, %3 in 0 : vector<8x17x4xbf16>, vector<1x17x4xbf16> -> vector<9x17x4xbf16>
    %5 = vector.extract_strided_slice %4 {offsets = [0, 0, 0], sizes = [8, 16, 4], strides = [1, 1, 1]} : vector<9x17x4xbf16> to vector<8x16x4xbf16>
    %6 = vector.extract_strided_slice %4 {offsets = [0, 1, 0], sizes = [8, 16, 4], strides = [1, 1, 1]} : vector<9x17x4xbf16> to vector<8x16x4xbf16>
    %7 = vector.extract_strided_slice %4 {offsets = [1, 0, 0], sizes = [8, 16, 4], strides = [1, 1, 1]} : vector<9x17x4xbf16> to vector<8x16x4xbf16>
    %8 = vector.extract_strided_slice %4 {offsets = [1, 1, 0], sizes = [8, 16, 4], strides = [1, 1, 1]} : vector<9x17x4xbf16> to vector<8x16x4xbf16>
    %9 = tpu.concatenate %5, %6, %7, %8 in 2 : vector<8x16x4xbf16>, vector<8x16x4xbf16>, vector<8x16x4xbf16>, vector<8x16x4xbf16> -> vector<8x16x16xbf16>
    %10 = vector.shape_cast %9 : vector<8x16x16xbf16> to vector<128x16xbf16>
    %c0_7 = arith.constant 0 : index
    %c0_8 = arith.constant 0 : index
    %11 = vector.load %arg4[%c0_7, %c0_8] : memref<16x32xbf16, #tpu.memory_space<vmem>>, vector<16x32xbf16>
    %cst = arith.constant dense<0.000000e+00> : vector<128x32xf32>
    %12 = tpu.matmul %10, %11, %cst {dimension_numbers = #tpu.dot_dimension_numbers<[1], [0], [0], [1], [0, 0, 1, 1], [], []>} : vector<128x16xbf16>, vector<16x32xbf16>, vector<128x32xf32> -> vector<128x32xf32>
    %13 = arith.truncf %12 : vector<128x32xf32> to vector<128x32xbf16>
    %14 = vector.shape_cast %13 : vector<128x32xbf16> to vector<1x8x16x32xbf16>
    %c0_9 = arith.constant 0 : index
    %c0_10 = arith.constant 0 : index
    %c0_11 = arith.constant 0 : index
    %c0_12 = arith.constant 0 : index
    %15 = vector.load %arg5[%c0_9, %c0_10, %c0_11, %c0_12] : memref<1x8x16x32xbf16, #tpu.memory_space<vmem>>, vector<1x8x16x32xbf16>
    tpu.vector_store %arg5[%c0_9, %c0_10, %c0_11, %c0_12], %14 {strides = array<i32>} : memref<1x8x16x32xbf16, #tpu.memory_space<vmem>>, vector<1x8x16x32xbf16>,
    %cst_13 = arith.constant 1.000000e+00 : f32
    %16 = vector.broadcast %cst_13 : f32 to vector<1x128xf32>
    %cst_14 = arith.constant dense<0.000000e+00> : vector<1x32xf32>
    %17 = tpu.matmul %16, %12, %cst_14 {dimension_numbers = #tpu.dot_dimension_numbers<[1], [0], [0], [1], [0, 0, 1, 1], [], []>} : vector<1x128xf32>, vector<128x32xf32>, vector<1x32xf32> -> vector<1x32xf32>
    %18 = vector.shape_cast %17 : vector<1x32xf32> to vector<1x1x1x32xf32>
    %c0_15 = arith.constant 0 : index
    %c0_16 = arith.constant 0 : index
    %c0_17 = arith.constant 0 : index
    %c0_18 = arith.constant 0 : index
    %19 = vector.load %arg6[%c0_15, %c0_16, %c0_17, %c0_18] : memref<1x1x1x32xf32, #tpu.memory_space<vmem>>, vector<1x1x1x32xf32>
    tpu.vector_store %arg6[%c0_15, %c0_16, %c0_17, %c0_18], %18 {strides = array<i32>} : memref<1x1x1x32xf32, #tpu.memory_space<vmem>>, vector<1x1x1x32xf32>,
    %20 = arith.mulf %12, %12 : vector<128x32xf32>
    %cst_19 = arith.constant dense<0.000000e+00> : vector<1x32xf32>
    %21 = tpu.matmul %16, %20, %cst_19 {dimension_numbers = #tpu.dot_dimension_numbers<[1], [0], [0], [1], [0, 0, 1, 1], [], []>} : vector<1x128xf32>, vector<128x32xf32>, vector<1x32xf32> -> vector<1x32xf32>
    %22 = vector.shape_cast %21 : vector<1x32xf32> to vector<1x1x1x32xf32>
    %c0_20 = arith.constant 0 : index
    %c0_21 = arith.constant 0 : index
    %c0_22 = arith.constant 0 : index
    %c0_23 = arith.constant 0 : index
    %23 = vector.load %arg7[%c0_20, %c0_21, %c0_22, %c0_23] : memref<1x1x1x32xf32, #tpu.memory_space<vmem>>, vector<1x1x1x32xf32>
    tpu.vector_store %arg7[%c0_20, %c0_21, %c0_22, %c0_23], %22 {strides = array<i32>} : memref<1x1x1x32xf32, #tpu.memory_space<vmem>>, vector<1x1x1x32xf32>,
    return
  }
  func.func @transform_0(%arg0: i32, %arg1: i32) -> (i32, i32, i32, i32) {
    %c0_i32 = arith.constant 0 : i32
    %c0_i32_0 = arith.constant 0 : i32
    %c0_i32_1 = arith.constant 0 : i32
    return %arg0, %arg1, %c0_i32, %c0_i32_0 : i32, i32, i32, i32
  }
  func.func @transform_1(%arg0: i32, %arg1: i32) -> (i32, i32, i32, i32) {
    %c1_i32 = arith.constant 1 : i32
    %0 = arith.addi %arg1, %c1_i32 : i32
    %c8_i32 = arith.constant 8 : i32
    %1 = arith.muli %0, %c8_i32 : i32
    %c0_i32 = arith.constant 0 : i32
    %c0_i32_0 = arith.constant 0 : i32
    %c0_i32_1 = arith.constant 0 : i32
    return %arg0, %1, %c0_i32, %c0_i32_0 : i32, i32, i32, i32
  }
  func.func @transform_2(%arg0: i32, %arg1: i32) -> (i32, i32) {
    %c0_i32 = arith.constant 0 : i32
    %c0_i32_0 = arith.constant 0 : i32
    %c0_i32_1 = arith.constant 0 : i32
    return %c0_i32, %c0_i32_0 : i32, i32
  }
  func.func @transform_3(%arg0: i32, %arg1: i32) -> (i32, i32, i32, i32) {
    %c0_i32 = arith.constant 0 : i32
    %c0_i32_0 = arith.constant 0 : i32
    %c0_i32_1 = arith.constant 0 : i32
    return %arg0, %arg1, %c0_i32, %c0_i32_0 : i32, i32, i32, i32
  }
  func.func @transform_4(%arg0: i32, %arg1: i32) -> (i32, i32, i32, i32) {
    %c0_i32 = arith.constant 0 : i32
    %c0_i32_0 = arith.constant 0 : i32
    %c0_i32_1 = arith.constant 0 : i32
    return %arg0, %arg1, %c0_i32, %c0_i32_0 : i32, i32, i32, i32
  }
  func.func @transform_5(%arg0: i32, %arg1: i32) -> (i32, i32, i32, i32) {
    %c0_i32 = arith.constant 0 : i32
    %c0_i32_0 = arith.constant 0 : i32
    %c0_i32_1 = arith.constant 0 : i32
    return %arg0, %arg1, %c0_i32, %c0_i32_0 : i32, i32, i32, i32
  }
}

</mosaic_0001>

<llo_original>
// kernel: tile.17
$region0: #{tile.17}
  #allocation0 [shape = 's32[1]{0}', space=sflag, size = 0x4, scoped, tag = 'scoped memory for tile.17']
  %s0 = inlined_call_operand.vmem [shape: f32[8], index: 0, kind: input, shape index: {}]
  %s1 = inlined_call_operand.vmem [shape: f32[4,8], index: 1, kind: output, shape index: {}]
  // Predicated region
  $region2: #{tile.17} parent=0 // pred_check
    _
  $region3: #{tile.17} parent=0 // pred_check_branch
    %3 = sbr.rel (0) target = $region5
  $region4: #{tile.17} parent=0 // pred_region
    _
  $region5: #{tile.17} parent=0 // pred_fallthru
    _
  %v4 = vld [vmem:[%s0] ss:$0 sm:$0xff]
  %5 = vst [vmem:[%s1] sm:$0xf] %v4

// kernel: up_forward.1
$region0: #{up_forward.1}
  #allocation0 [shape = 'u32[]', space=smem, size = 0x4, offset = 0x4, fixed_abs, tag = 'smem constant byte address 0x4 - core index']
  #allocation1 [shape = 'u32[144,128]{1,0:T(1,128)}', space=vmem, size = 0x12000, scoped, tag = 'internal scratch']
  %s0 = inlined_call_operand.vmem [shape: bf16[2,17,17,4], index: 0, kind: input, shape index: {}, may-alias: {0,1}]
  %s1 = inlined_call_operand.vmem [shape: bf16[2,17,17,4], index: 1, kind: input, shape index: {}, may-alias: {0,1}]
  %s2 = inlined_call_operand.vmem [shape: bf16[16,32], index: 2, kind: input, shape index: {}]
  %s3 = inlined_call_operand.vmem [shape: bf16[2,16,16,32], index: 3, kind: output, shape index: {0}]
  %s4 = inlined_call_operand.vmem [shape: f32[2,2,1,32], index: 4, kind: output, shape index: {1}]
  %s5 = inlined_call_operand.vmem [shape: f32[2,2,1,32], index: 5, kind: output, shape index: {2}]
  %6 = xla_tuple %s3, %s4, %s5
  %s7 = sld [smem:[#allocation0]]
  $region61: #{up_forward.1} parent=0
    _
  %s9 = ssub.s32 1, %s7
  %s10 = scalar_select 0, %s9, %s7
  loop: start=0, step=1, limit=6
  $region2: #{up_forward.1} parent=0 // loop_pre_header
    _
  $region3: #{up_forward.1} parent=0 // loop_header
    %s12 = sphi 0, %s16
    %p13 = scmp.ge.s32.totalorder %s12, 6
    %s19 = sphi 0, %s31
    %s20 = sphi 0, %s27
    %s21 = sphi 0, %s19
    %s22 = sphi 0, %s20
    %s23 = sphi 0, %s21
    %s24 = sphi 0, %s22
    %s36 = sphi 0, %s38
    %s39 = sphi 0, %s36
    %s40 = sphi 0, %s39
    %s56 = sphi 0, %s40
    %s68 = sphi 0, %s70
    %s71 = sphi 0, %s68
    %s72 = sphi 0, %s71
    %s88 = sphi 0, %s72
    %s92 = sphi 0, %s92
    %s94 = sphi 0, %s92
    %s95 = sphi 0, %s94
    %s109 = sphi 0, %s95
    %s117 = sphi 0, %s119
    %s120 = sphi 0, %s117
    %s121 = sphi 0, %s120
    %s137 = sphi 0, %s121
    %s145 = sphi 0, %s147
    %s148 = sphi 0, %s145
    %s149 = sphi 0, %s148
    %s165 = sphi 0, %s149
    %s173 = sphi 0, %s175
    %s176 = sphi 0, %s173
    %s177 = sphi 0, %s176
    %s193 = sphi 0, %s177
  $region4: #{up_forward.1} parent=0 // loop_header_branch
    %15 = sbr.rel (%p13) target = $region8
  $region5: #{up_forward.1} parent=0 // loop_body
    %s17 = ssub.s32 %s12, 1
    %s18 = ssub.s32 %s12, 2
    %s25 = sadd.s32 1, %s20
    %p26 = scmp.ge.s32.totalorder %s25, 2
    %s27 = scalar_select %p26, 0, %s25
    %s28 = sadd.s32 1, %s19
    %s29 = scalar_select %p26, %s28, %s19
    %p30 = scmp.ge.s32.totalorder %s29, 2
    %s31 = scalar_select %p30, 0, %s29
    %s32 = ssub.s32 %s19, %s31
    %s33 = ssub.s32 %s20, %s27
    %s34 = sor.u32 %s32, %s33
    %p35 = scmp.eq.s32.totalorder %s34, 0
    %s37 = sadd.s32 %s36, 1
    %s38 = scalar_select %p35, %s36, %s37
    %p41 = pneg %p35
    %p42 = scmp.eq.s32.totalorder %s12, 3
    %p43 = por %p41, %p42
    %p44 = scmp.ne.s32.totalorder %s36, %s39
    %p45 = scmp.eq.s32.totalorder %s12, 0
    %p46 = por %p44, %p45
    %p47 = scmp.ne.s32.totalorder %s36, %s39
    %p48 = scmp.eq.s32.totalorder %s17, 3
    %p49 = por %p47, %p48
    %p50 = scmp.ne.s32.totalorder %s39, %s40
    %p51 = scmp.eq.s32.totalorder %s17, 0
    %p52 = por %p50, %p51
    %p53 = scmp.ne.s32.totalorder %s39, %s40
    %p54 = scmp.eq.s32.totalorder %s18, 3
    %p55 = por %p53, %p54
    %p57 = scmp.ne.s32.totalorder %s40, %s56
    %p58 = scmp.eq.s32.totalorder %s18, 0
    %p59 = por %p57, %p58
    %s60 = sadd.s32 %s20, 1
    %s61 = smul.u32 %s60, 8
    %s62 = sadd.s32 %s27, 1
    %s63 = smul.u32 %s62, 8
    %s64 = ssub.s32 %s19, %s31
    %s65 = ssub.s32 %s61, %s63
    %s66 = sor.u32 %s64, %s65
    %p67 = scmp.eq.s32.totalorder %s66, 0
    %s69 = sadd.s32 %s68, 1
    %s70 = scalar_select %p67, %s68, %s69
    %p73 = pneg %p67
    %p74 = scmp.eq.s32.totalorder %s12, 3
    %p75 = por %p73, %p74
    %p76 = scmp.ne.s32.totalorder %s68, %s71
    %p77 = scmp.eq.s32.totalorder %s12, 0
    %p78 = por %p76, %p77
    %p79 = scmp.ne.s32.totalorder %s68, %s71
    %p80 = scmp.eq.s32.totalorder %s17, 3
    %p81 = por %p79, %p80
    %p82 = scmp.ne.s32.totalorder %s71, %s72
    %p83 = scmp.eq.s32.totalorder %s17, 0
    %p84 = por %p82, %p83
    %p85 = scmp.ne.s32.totalorder %s71, %s72
    %p86 = scmp.eq.s32.totalorder %s18, 3
    %p87 = por %p85, %p86
    %p89 = scmp.ne.s32.totalorder %s72, %s88
    %p90 = scmp.eq.s32.totalorder %s18, 0
    %p91 = por %p89, %p90
    %s93 = sadd.s32 %s92, 1
    %p96 = scmp.eq.s32.totalorder %s12, 3
    %p97 = scmp.ne.s32.totalorder %s92, %s94
    %p98 = scmp.eq.s32.totalorder %s12, 0
    %p99 = por %p97, %p98
    %p100 = scmp.ne.s32.totalorder %s92, %s94
    %p101 = scmp.eq.s32.totalorder %s17, 3
    %p102 = por %p100, %p101
    %p103 = scmp.ne.s32.totalorder %s94, %s95
    %p104 = scmp.eq.s32.totalorder %s17, 0
    %p105 = por %p103, %p104
    %p106 = scmp.ne.s32.totalorder %s94, %s95
    %p107 = scmp.eq.s32.totalorder %s18, 3
    %p108 = por %p106, %p107
    %p110 = scmp.ne.s32.totalorder %s95, %s109
    %p111 = scmp.eq.s32.totalorder %s18, 0
    %p112 = por %p110, %p111
    %s113 = ssub.s32 %s19, %s31
    %s114 = ssub.s32 %s20, %s27
    %s115 = sor.u32 %s113, %s114
    %p116 = scmp.eq.s32.totalorder %s115, 0
    %s118 = sadd.s32 %s117, 1
    %s119 = scalar_select %p116, %s117, %s118
    %p122 = pneg %p116
    %p123 = scmp.eq.s32.totalorder %s12, 3
    %p124 = por %p122, %p123
    %p125 = scmp.ne.s32.totalorder %s117, %s120
    %p126 = scmp.eq.s32.totalorder %s12, 0
    %p127 = por %p125, %p126
    %p128 = scmp.ne.s32.totalorder %s117, %s120
    %p129 = scmp.eq.s32.totalorder %s17, 3
    %p130 = por %p128, %p129
    %p131 = scmp.ne.s32.totalorder %s120, %s121
    %p132 = scmp.eq.s32.totalorder %s17, 0
    %p133 = por %p131, %p132
    %p134 = scmp.ne.s32.totalorder %s120, %s121
    %p135 = scmp.eq.s32.totalorder %s18, 3
    %p136 = por %p134, %p135
    %p138 = scmp.ne.s32.totalorder %s121, %s137
    %p139 = scmp.eq.s32.totalorder %s18, 0
    %p140 = por %p138, %p139
    %s141 = ssub.s32 %s19, %s31
    %s142 = ssub.s32 %s20, %s27
    %s143 = sor.u32 %s141, %s142
    %p144 = scmp.eq.s32.totalorder %s143, 0
    %s146 = sadd.s32 %s145, 1
    %s147 = scalar_select %p144, %s145, %s146
    %p150 = pneg %p144
    %p151 = scmp.eq.s32.totalorder %s12, 3
    %p152 = por %p150, %p151
    %p153 = scmp.ne.s32.totalorder %s145, %s148
    %p154 = scmp.eq.s32.totalorder %s12, 0
    %p155 = por %p153, %p154
    %p156 = scmp.ne.s32.totalorder %s145, %s148
    %p157 = scmp.eq.s32.totalorder %s17, 3
    %p158 = por %p156, %p157
    %p159 = scmp.ne.s32.totalorder %s148, %s149
    %p160 = scmp.eq.s32.totalorder %s17, 0
    %p161 = por %p159, %p160
    %p162 = scmp.ne.s32.totalorder %s148, %s149
    %p163 = scmp.eq.s32.totalorder %s18, 3
    %p164 = por %p162, %p163
    %p166 = scmp.ne.s32.totalorder %s149, %s165
    %p167 = scmp.eq.s32.totalorder %s18, 0
    %p168 = por %p166, %p167
    %s169 = ssub.s32 %s19, %s31
    %s170 = ssub.s32 %s20, %s27
    %s171 = sor.u32 %s169, %s170
    %p172 = scmp.eq.s32.totalorder %s171, 0
    %s174 = sadd.s32 %s173, 1
    %s175 = scalar_select %p172, %s173, %s174
    %p178 = pneg %p172
    %p179 = scmp.eq.s32.totalorder %s12, 3
    %p180 = por %p178, %p179
    %p181 = scmp.ne.s32.totalorder %s173, %s176
    %p182 = scmp.eq.s32.totalorder %s12, 0
    %p183 = por %p181, %p182
    %p184 = scmp.ne.s32.totalorder %s173, %s176
    %p185 = scmp.eq.s32.totalorder %s17, 3
    %p186 = por %p184, %p185
    %p187 = scmp.ne.s32.totalorder %s176, %s177
    %p188 = scmp.eq.s32.totalorder %s17, 0
    %p189 = por %p187, %p188
    %p190 = scmp.ne.s32.totalorder %s176, %s177
    %p191 = scmp.eq.s32.totalorder %s18, 3
    %p192 = por %p190, %p191
    %p194 = scmp.ne.s32.totalorder %s177, %s193
    %p195 = scmp.eq.s32.totalorder %s18, 0
    %p196 = por %p194, %p195
    %p197 = scmp.le.s32.totalorder 1, %s12
    %p198 = scmp.lt.s32.totalorder %s12, 5
    %p199 = pnand %p197, %p198
    %p200 = pneg %p199
    // Predicated region
    $region9: #{up_forward.1} parent=5 // pred_check
      _
    $region10: #{up_forward.1} parent=5 // pred_check_branch
      %202 = sbr.rel (%p199) target = $region12
    $region11: #{up_forward.1} parent=5 // pred_region
      %s203 = ssub.s32 %s12, 1
      // Predicated region
      $region13: #{up_forward.1} parent=11 // pred_check
        %p204 = pneg %p105
      $region14: #{up_forward.1} parent=11 // pred_check_branch
        %206 = sbr.rel (%p204) target = $region16
      $region15: #{up_forward.1} parent=11 // pred_region
        _
      $region16: #{up_forward.1} parent=11 // pred_fallthru
        _
    $region12: #{up_forward.1} parent=5 // pred_fallthru
      _
    %p207 = scmp.lt.s32.totalorder %s12, 4
    // Predicated region
    $region17: #{up_forward.1} parent=5 // pred_check
      %p208 = pneg %p207
    $region18: #{up_forward.1} parent=5 // pred_check_branch
      %210 = sbr.rel (%p208) target = $region20
    $region19: #{up_forward.1} parent=5 // pred_region
      // Predicated region
      $region21: #{up_forward.1} parent=19 // pred_check
        %p211 = pneg %p46
      $region22: #{up_forward.1} parent=19 // pred_check_branch
        %213 = sbr.rel (%p211) target = $region24
      $region23: #{up_forward.1} parent=19 // pred_region
        %s214 = smul.u32 8, %s20
        %s215 = ssub.s32 17, %s214
        %p216 = scmp.lt.s32.totalorder %s215, 8
        %s217 = scalar_select %p216, %s215, 8
        %s218 = smul.u32 64, %s217
        %s219 = smul.u32 %s218, 3
        %p220 = scmp.lt.s32.totalorder %s19, 1
        %s221 = scalar_select %p220, %s19, 1
        %p222 = scmp.lt.s32.totalorder %s214, 16
        %s223 = scalar_select %p222, %s214, 16
        %s224 = smul.addr %s223, 3
        %s225 = smul.addr %s221, 51
        %s226 = sadd.s32 %s224, %s225
        %s227 = smul.addr %s226, 4
        %s228 = scalar_lea.vmem %s0, %s227
        %s229 = smul.u32 8, %s20
        %s230 = ssub.s32 17, %s229
        %p231 = scmp.lt.s32.totalorder %s230, 8
        %s232 = scalar_select %p231, %s230, 8
        %s233 = smul.u32 64, %s232
        %s234 = smul.u32 %s233, 3
      $region24: #{up_forward.1} parent=19 // pred_fallthru
        _
      // Predicated region
      $region25: #{up_forward.1} parent=19 // pred_check
        %p235 = pneg %p78
      $region26: #{up_forward.1} parent=19 // pred_check_branch
        %237 = sbr.rel (%p235) target = $region28
      $region27: #{up_forward.1} parent=19 // pred_region
        %s238 = sadd.s32 %s20, 1
        %s239 = smul.u32 %s238, 8
        %p240 = scmp.lt.s32.totalorder %s19, 1
        %s241 = scalar_select %p240, %s19, 1
        %p242 = scmp.lt.s32.totalorder %s239, 16
        %s243 = scalar_select %p242, %s239, 16
        %s244 = smul.addr %s243, 3
        %s245 = smul.addr %s241, 51
        %s246 = sadd.s32 %s244, %s245
        %s247 = smul.addr %s246, 4
        %s248 = scalar_lea.vmem %s1, %s247
        %s249 = sadd.s32 %s20, 1
        %s250 = smul.u32 %s249, 8
      $region28: #{up_forward.1} parent=19 // pred_fallthru
        _
    $region20: #{up_forward.1} parent=5 // pred_fallthru
      _
    %p251 = scmp.le.s32.totalorder 1, %s12
    %p252 = scmp.lt.s32.totalorder %s12, 5
    %p253 = pnand %p251, %p252
    %p254 = pneg %p253
    // Predicated region
    $region29: #{up_forward.1} parent=5 // pred_check
      _
    $region30: #{up_forward.1} parent=5 // pred_check_branch
      %256 = sbr.rel (%p253) target = $region32
    $region31: #{up_forward.1} parent=5 // pred_region
      %s257 = ssub.s32 %s12, 1
      %s258 = smul.u32 8, %s22
      %s259 = ssub.s32 17, %s258
      %p260 = scmp.lt.s32.totalorder %s259, 8
      %s261 = scalar_select %p260, %s259, 8
      %s262 = smul.u32 64, %s261
      %s263 = smul.u32 %s262, 3
      %p264 = scmp.lt.s32.totalorder %s21, 1
      %s265 = scalar_select %p264, %s21, 1
      %p266 = scmp.lt.s32.totalorder %s258, 16
      %s267 = scalar_select %p266, %s258, 16
      %s268 = smul.addr %s267, 3
      %s269 = smul.addr %s265, 51
      %s270 = sadd.s32 %s268, %s269
      %s271 = smul.addr %s270, 4
      %s272 = scalar_lea.vmem %s0, %s271
      %p273 = pneg %p52
      %p274 = pneg %p49
      %s275 = sadd.s32 %s22, 1
      %s276 = smul.u32 %s275, 8
      %p277 = scmp.lt.s32.totalorder %s21, 1
      %s278 = scalar_select %p277, %s21, 1
      %p279 = scmp.lt.s32.totalorder %s276, 16
      %s280 = scalar_select %p279, %s276, 16
      %s281 = smul.addr %s280, 3
      %s282 = smul.addr %s278, 51
      %s283 = sadd.s32 %s281, %s282
      %s284 = smul.addr %s283, 4
      %s285 = scalar_lea.vmem %s1, %s284
      %p286 = pneg %p84
      %p287 = pneg %p81
      %p288 = pneg %p105
      %p289 = pneg %p102
      %p290 = pneg %p133
      %p291 = pneg %p130
      %s292 = smul.u32 8, %s22
      %p293 = scmp.lt.s32.totalorder %s21, 1
      %s294 = scalar_select %p293, %s21, 1
      %p295 = scmp.lt.s32.totalorder %s292, 15
      %s296 = scalar_select %p295, %s292, 15
      %s297 = smul.addr %s296, 2
      %s298 = smul.addr %s294, 32
      %s299 = sadd.s32 %s297, %s298
      %s300 = smul.addr %s299, 4
      %s301 = scalar_lea.vmem %s3, %s300
      %p302 = pneg %p161
      %p303 = pneg %p158
      %p304 = scmp.lt.s32.totalorder %s21, 1
      %s305 = scalar_select %p304, %s21, 1
      %p306 = scmp.lt.s32.totalorder %s22, 1
      %s307 = scalar_select %p306, %s22, 1
      %s308 = smul.addr %s305, 2
      %s309 = sadd.s32 %s307, %s308
      %s310 = scalar_lea.vmem %s4, %s309
      %p311 = pneg %p189
      %p312 = pneg %p186
      %p313 = scmp.lt.s32.totalorder %s21, 1
      %s314 = scalar_select %p313, %s21, 1
      %p315 = scmp.lt.s32.totalorder %s22, 1
      %s316 = scalar_select %p315, %s22, 1
      %s317 = smul.addr %s314, 2
      %s318 = sadd.s32 %s316, %s317
      %s319 = scalar_lea.vmem %s5, %s318
      %s320 = smul.u32 8, %s22
      %s321 = ssub.s32 17, %s320
      %p322 = scmp.lt.s32.totalorder %s321, 8
      %s323 = scalar_select %p322, %s321, 8
      %s324 = smul.u32 64, %s323
      %s325 = smul.u32 %s324, 3
      %p326 = scmp.lt.s32.totalorder %s21, 1
      %s327 = scalar_select %p326, %s21, 1
      %p328 = scmp.lt.s32.totalorder %s320, 16
      %s329 = scalar_select %p328, %s320, 16
      %s330 = smul.addr %s329, 3
      %s331 = smul.addr %s327, 51
      %s332 = sadd.s32 %s330, %s331
      %s333 = smul.addr %s332, 4
      %s334 = scalar_lea.vmem %s0, %s333
      %s335 = smul.u32 8, %s22
      %s336 = ssub.s32 17, %s335
      %p337 = scmp.lt.s32.totalorder %s336, 8
      %s338 = scalar_select %p337, %s336, 8
      %s339 = smul.u32 64, %s338
      %s340 = smul.u32 %s339, 3
      %s341 = sadd.s32 %s22, 1
      %s342 = smul.u32 %s341, 8
      %p343 = scmp.lt.s32.totalorder %s21, 1
      %s344 = scalar_select %p343, %s21, 1
      %p345 = scmp.lt.s32.totalorder %s342, 16
      %s346 = scalar_select %p345, %s342, 16
      %s347 = smul.addr %s346, 3
      %s348 = smul.addr %s344, 51
      %s349 = sadd.s32 %s347, %s348
      %s350 = smul.addr %s349, 4
      %s351 = scalar_lea.vmem %s1, %s350
      %s352 = sadd.s32 %s22, 1
      %s353 = smul.u32 %s352, 8
      %s354 = smul.u32 8, %s22
      %p355 = scmp.lt.s32.totalorder %s21, 1
      %s356 = scalar_select %p355, %s21, 1
      %p357 = scmp.lt.s32.totalorder %s354, 15
      %s358 = scalar_select %p357, %s354, 15
      %s359 = smul.addr %s358, 2
      %s360 = smul.addr %s356, 32
      %s361 = sadd.s32 %s359, %s360
      %s362 = smul.addr %s361, 4
      %s363 = scalar_lea.vmem %s3, %s362
      %s364 = smul.u32 8, %s22
      %p365 = scmp.lt.s32.totalorder %s21, 1
      %s366 = scalar_select %p365, %s21, 1
      %p367 = scmp.lt.s32.totalorder %s22, 1
      %s368 = scalar_select %p367, %s22, 1
      %s369 = smul.addr %s366, 2
      %s370 = sadd.s32 %s368, %s369
      %s371 = scalar_lea.vmem %s4, %s370
      %p372 = scmp.lt.s32.totalorder %s21, 1
      %s373 = scalar_select %p372, %s21, 1
      %p374 = scmp.lt.s32.totalorder %s22, 1
      %s375 = scalar_select %p374, %s22, 1
      %s376 = smul.addr %s373, 2
      %s377 = sadd.s32 %s375, %s376
      %s378 = scalar_lea.vmem %s5, %s377
      %v380 = vld [vmem:[%s334] sm:$0xf]
      %v381 = vld [vmem:[%s334 + $0x4] sm:$0xf]
      %v382 = vld [vmem:[%s334 + $0x8] sm:$0x1]
      %v383 = vld [vmem:[%s334 + $0xc] sm:$0xf]
      %v384 = vld [vmem:[%s334 + $0x10] sm:$0xf]
      %v385 = vld [vmem:[%s334 + $0x14] sm:$0x1]
      %v386 = vld [vmem:[%s334 + $0x18] sm:$0xf]
      %v387 = vld [vmem:[%s334 + $0x1c] sm:$0xf]
      %v388 = vld [vmem:[%s334 + $0x20] sm:$0x1]
      %v389 = vld [vmem:[%s334 + $0x24] sm:$0xf]
      %v390 = vld [vmem:[%s334 + $0x28] sm:$0xf]
      %v391 = vld [vmem:[%s334 + $0x2c] sm:$0x1]
      %v392 = vld [vmem:[%s334 + $0x30] sm:$0xf]
      %v393 = vld [vmem:[%s334 + $0x34] sm:$0xf]
      %v394 = vld [vmem:[%s334 + $0x38] sm:$0x1]
      %v395 = vld [vmem:[%s334 + $0x3c] sm:$0xf]
      %v396 = vld [vmem:[%s334 + $0x40] sm:$0xf]
      %v397 = vld [vmem:[%s334 + $0x44] sm:$0x1]
      %v398 = vld [vmem:[%s334 + $0x48] sm:$0xf]
      %v399 = vld [vmem:[%s334 + $0x4c] sm:$0xf]
      %v400 = vld [vmem:[%s334 + $0x50] sm:$0x1]
      %v401 = vld [vmem:[%s334 + $0x54] sm:$0xf]
      %v402 = vld [vmem:[%s334 + $0x58] sm:$0xf]
      %v403 = vld [vmem:[%s334 + $0x5c] sm:$0x1]
      %v404 = vld [vmem:[%s351] sm:$0xf]
      %v405 = vld [vmem:[%s351 + $0x4] sm:$0xf]
      %v406 = vld [vmem:[%s351 + $0x8] sm:$0x1]
      %v423 = vunpack.c.l.b16 %v380
      %v424 = vunpack.c.l.b16 %v381
      %v425 = vunpack.c.l.b16 %v383
      %v426 = vunpack.c.l.b16 %v384
      %v427 = vunpack.c.l.b16 %v386
      %v428 = vunpack.c.l.b16 %v387
      %v429 = vunpack.c.l.b16 %v389
      %v430 = vunpack.c.l.b16 %v390
      %v431 = vunpack.c.l.b16 %v392
      %v432 = vunpack.c.l.b16 %v393
      %v433 = vunpack.c.l.b16 %v395
      %v434 = vunpack.c.l.b16 %v396
      %v435 = vunpack.c.l.b16 %v398
      %v436 = vunpack.c.l.b16 %v399
      %v437 = vunpack.c.l.b16 %v401
      %v438 = vunpack.c.l.b16 %v402
      %v439 = vpack.c.b16 %v424, %v423
      %v440 = vpack.c.b16 %v426, %v425
      %v441 = vpack.c.b16 %v428, %v427
      %v442 = vpack.c.b16 %v430, %v429
      %v443 = vpack.c.b16 %v432, %v431
      %v444 = vpack.c.b16 %v434, %v433
      %v445 = vpack.c.b16 %v436, %v435
      %v446 = vpack.c.b16 %v438, %v437
      %v455 = vunpack.c.l.b16 %v382
      %v456 = vunpack.c.l.b16 %v385
      %v457 = vunpack.c.l.b16 %v388
      %v458 = vunpack.c.l.b16 %v391
      %v459 = vunpack.c.l.b16 %v394
      %v460 = vunpack.c.l.b16 %v397
      %v461 = vunpack.c.l.b16 %v400
      %v462 = vunpack.c.l.b16 %v403
      %v463 = vpack.c.b16 %v455, %v455
      %v464 = vpack.c.b16 %v456, %v456
      %v465 = vpack.c.b16 %v457, %v457
      %v466 = vpack.c.b16 %v458, %v458
      %v467 = vpack.c.b16 %v459, %v459
      %v468 = vpack.c.b16 %v460, %v460
      %v469 = vpack.c.b16 %v461, %v461
      %v470 = vpack.c.b16 %v462, %v462
      %vm471 = vsmask.f32 7424
      %v473 = vshrl.u32 %v439, 16
      %v475 = vshll.u32 %v439, 16
      %v477 = vrot.slane %v475, 1
      %v478 = vor.u32 %v473, %v477
      %v480 = vshll.u32 %v463, 16
      %v482 = vrot.slane %v480, 1
      %v483 = vsel %vm471, %v478, %v482
      %v485 = vshrl.u32 %v440, 16
      %v487 = vshll.u32 %v440, 16
      %v489 = vrot.slane %v487, 1
      %v490 = vor.u32 %v485, %v489
      %v492 = vshll.u32 %v464, 16
      %v494 = vrot.slane %v492, 1
      %v495 = vsel %vm471, %v490, %v494
      %v497 = vshrl.u32 %v441, 16
      %v499 = vshll.u32 %v441, 16
      %v501 = vrot.slane %v499, 1
      %v502 = vor.u32 %v497, %v501
      %v504 = vshll.u32 %v465, 16
      %v506 = vrot.slane %v504, 1
      %v507 = vsel %vm471, %v502, %v506
      %v509 = vshrl.u32 %v442, 16
      %v511 = vshll.u32 %v442, 16
      %v513 = vrot.slane %v511, 1
      %v514 = vor.u32 %v509, %v513
      %v516 = vshll.u32 %v466, 16
      %v518 = vrot.slane %v516, 1
      %v519 = vsel %vm471, %v514, %v518
      %v521 = vshrl.u32 %v443, 16
      %v523 = vshll.u32 %v443, 16
      %v525 = vrot.slane %v523, 1
      %v526 = vor.u32 %v521, %v525
      %v528 = vshll.u32 %v467, 16
      %v530 = vrot.slane %v528, 1
      %v531 = vsel %vm471, %v526, %v530
      %v533 = vshrl.u32 %v444, 16
      %v535 = vshll.u32 %v444, 16
      %v537 = vrot.slane %v535, 1
      %v538 = vor.u32 %v533, %v537
      %v540 = vshll.u32 %v468, 16
      %v542 = vrot.slane %v540, 1
      %v543 = vsel %vm471, %v538, %v542
      %v545 = vshrl.u32 %v445, 16
      %v547 = vshll.u32 %v445, 16
      %v549 = vrot.slane %v547, 1
      %v550 = vor.u32 %v545, %v549
      %v552 = vshll.u32 %v469, 16
      %v554 = vrot.slane %v552, 1
      %v555 = vsel %vm471, %v550, %v554
      %v557 = vshrl.u32 %v446, 16
      %v559 = vshll.u32 %v446, 16
      %v561 = vrot.slane %v559, 1
      %v562 = vor.u32 %v557, %v561
      %v564 = vshll.u32 %v470, 16
      %v566 = vrot.slane %v564, 1
      %v567 = vsel %vm471, %v562, %v566
      %568 = vrot.lane.b32.xlu0 %v483, 4
      %v569 = vpop.permute.xlu0 %568
      %570 = vrot.lane.b32.xlu0 %v495, 4
      %v571 = vpop.permute.xlu0 %570
      %572 = vrot.lane.b32.xlu0 %v507, 4
      %v573 = vpop.permute.xlu0 %572
      %574 = vrot.lane.b32.xlu0 %v519, 4
      %v575 = vpop.permute.xlu0 %574
      %576 = vrot.lane.b32.xlu0 %v531, 4
      %v577 = vpop.permute.xlu0 %576
      %578 = vrot.lane.b32.xlu0 %v543, 4
      %v579 = vpop.permute.xlu0 %578
      %580 = vrot.lane.b32.xlu0 %v555, 4
      %v581 = vpop.permute.xlu0 %580
      %582 = vrot.lane.b32.xlu0 %v567, 4
      %v583 = vpop.permute.xlu0 %582
      %v586 = vunpack.c.l.b16 %v404
      %v587 = vunpack.c.l.b16 %v405
      %v588 = vpack.c.b16 %v587, %v586
      %589 = vrot.lane.b32.xlu0 %v440, 8
      %v590 = vpop.permute.xlu0 %589
      %591 = vrot.lane.b32.xlu0 %v441, 8
      %v592 = vpop.permute.xlu0 %591
      %593 = vrot.lane.b32.xlu0 %v442, 8
      %v594 = vpop.permute.xlu0 %593
      %595 = vrot.lane.b32.xlu0 %v443, 8
      %v596 = vpop.permute.xlu0 %595
      %597 = vrot.lane.b32.xlu0 %v444, 8
      %v598 = vpop.permute.xlu0 %597
      %599 = vrot.lane.b32.xlu0 %v445, 8
      %v600 = vpop.permute.xlu0 %599
      %601 = vrot.lane.b32.xlu0 %v446, 8
      %v602 = vpop.permute.xlu0 %601
      %603 = vrot.lane.b32.xlu0 %v588, 8
      %v604 = vpop.permute.xlu0 %603
      %v606 = vunpack.c.l.b16 %v406
      %v607 = vpack.c.b16 %v606, %v606
      %v609 = vshrl.u32 %v588, 16
      %v611 = vshll.u32 %v588, 16
      %v613 = vrot.slane %v611, 1
      %v614 = vor.u32 %v609, %v613
      %v616 = vshll.u32 %v607, 16
      %v618 = vrot.slane %v616, 1
      %v619 = vsel %vm471, %v614, %v618
      %620 = vrot.lane.b32.xlu0 %v495, 12
      %v621 = vpop.permute.xlu0 %620
      %622 = vrot.lane.b32.xlu0 %v507, 12
      %v623 = vpop.permute.xlu0 %622
      %624 = vrot.lane.b32.xlu0 %v519, 12
      %v625 = vpop.permute.xlu0 %624
      %626 = vrot.lane.b32.xlu0 %v531, 12
      %v627 = vpop.permute.xlu0 %626
      %628 = vrot.lane.b32.xlu0 %v543, 12
      %v629 = vpop.permute.xlu0 %628
      %630 = vrot.lane.b32.xlu0 %v555, 12
      %v631 = vpop.permute.xlu0 %630
      %632 = vrot.lane.b32.xlu0 %v567, 12
      %v633 = vpop.permute.xlu0 %632
      %634 = vrot.lane.b32.xlu0 %v619, 12
      %v635 = vpop.permute.xlu0 %634
      %vm636 = vcmask 31744
      %v638 = vsel %vm636, %v439, %v569
      %v640 = vsel %vm636, %v440, %v571
      %v642 = vsel %vm636, %v441, %v573
      %v644 = vsel %vm636, %v442, %v575
      %v646 = vsel %vm636, %v443, %v577
      %v648 = vsel %vm636, %v444, %v579
      %v650 = vsel %vm636, %v445, %v581
      %v652 = vsel %vm636, %v446, %v583
      %vm653 = vcmask 64512
      %v655 = vsel %vm653, %v638, %v590
      %v657 = vsel %vm653, %v640, %v592
      %v659 = vsel %vm653, %v642, %v594
      %v661 = vsel %vm653, %v644, %v596
      %v663 = vsel %vm653, %v646, %v598
      %v665 = vsel %vm653, %v648, %v600
      %v667 = vsel %vm653, %v650, %v602
      %v669 = vsel %vm653, %v652, %v604
      %vm670 = vcmask 97280
      %v672 = vsel %vm670, %v655, %v621
      %v674 = vsel %vm670, %v657, %v623
      %v676 = vsel %vm670, %v659, %v625
      %v678 = vsel %vm670, %v661, %v627
      %v680 = vsel %vm670, %v663, %v629
      %v682 = vsel %vm670, %v665, %v631
      %v684 = vsel %vm670, %v667, %v633
      %v686 = vsel %vm670, %v669, %v635
      %v687 = vld [vmem:[%s2] sm:$0xf]
      %v688 = vld [vmem:[%s2 + $0x4] sm:$0xf]
      %v691 = vunpack.c.l.b16 %v687
      %v692 = vunpack.c.l.b16 %v688
      %v693 = vpack.c.b16 %v692, %v691
      %vm695 = vcmask 130048
      %v696 = vsel %vm695, %v672, 0
      %v698 = vsel %vm695, %v674, 0
      %v700 = vsel %vm695, %v676, 0
      %v702 = vsel %vm695, %v678, 0
      %v704 = vsel %vm695, %v680, 0
      %v706 = vsel %vm695, %v682, 0
      %v708 = vsel %vm695, %v684, 0
      %v710 = vsel %vm695, %v686, 0
      %712 = vmatprep.subr.bf16.mxu0 0
      %713 = vmatpush1.bf16.msra.mxu0 0
      %714 = vmatprep.subr.bf16.mxu0 0
      %715 = vmatpush1.bf16.msra.mxu0 0
      %716 = vmatprep.subr.bf16.mxu0 0
      %717 = vmatpush1.bf16.msra.mxu0 0
      %718 = vmatprep.subr.bf16.mxu0 0
      %719 = vmatpush1.bf16.msra.mxu0 0
      %720 = vmatprep.subr.bf16.mxu0 0
      %721 = vmatpush1.bf16.msra.mxu0 0
      %722 = vmatprep.subr.bf16.mxu0 0
      %723 = vmatpush1.bf16.msra.mxu0 0
      %724 = vmatprep.subr.bf16.mxu0 0
      %725 = vmatpush1.bf16.msra.mxu0 0
      %726 = vmatprep.subr.bf16.mxu0 0
      %727 = vmatpush1.bf16.msra.mxu0 %v693
      %728 = vmatprep.subr.bf16.mxu0 0
      %729 = vmatpush2.bf16.msra.mxu0 0
      %730 = vmatprep.subr.bf16.mxu0 0
      %731 = vmatpush2.bf16.msra.mxu0 0
      %732 = vmatprep.subr.bf16.mxu0 0
      %733 = vmatpush2.bf16.msra.mxu0 0
      %734 = vmatprep.subr.bf16.mxu0 0
      %735 = vmatpush2.bf16.msra.mxu0 0
      %736 = vmatprep.subr.bf16.mxu0 0
      %737 = vmatpush2.bf16.msra.mxu0 0
      %738 = vmatprep.subr.bf16.mxu0 0
      %739 = vmatpush2.bf16.msra.mxu0 0
      %740 = vmatprep.subr.bf16.mxu0 0
      %741 = vmatpush2.bf16.msra.mxu0 0
      %742 = vmatprep.subr.bf16.mxu0 0
      %743 = vmatpush2.bf16.msra.mxu0 0
      %744 = vmatprep.mubr.bf16.mxu0 0
      %745 = vmatmul.mubr.bf16.gmra.mxu0 %v696
      %v746 = vpop.f32.mrf.mxu0
      %v747 = vadd.f32 0.0, %v746
      %v748 = vpop.f32.mrf.mxu0
      %v749 = vpop.f32.mrf.mxu0
      %v750 = vadd.f32 0.0, %v749
      %v751 = vpop.f32.mrf.mxu0
      %752 = vmatprep.mubr.bf16.mxu0 0
      %753 = vmatmul.mubr.bf16.gmra.mxu0 %v698
      %v754 = vpop.f32.mrf.mxu0
      %v755 = vadd.f32 0.0, %v754
      %v756 = vpop.f32.mrf.mxu0
      %v757 = vpop.f32.mrf.mxu0
      %v758 = vadd.f32 0.0, %v757
      %v759 = vpop.f32.mrf.mxu0
      %760 = vmatprep.mubr.bf16.mxu0 0
      %761 = vmatmul.mubr.bf16.gmra.mxu0 %v700
      %v762 = vpop.f32.mrf.mxu0
      %v763 = vadd.f32 0.0, %v762
      %v764 = vpop.f32.mrf.mxu0
      %v765 = vpop.f32.mrf.mxu0
      %v766 = vadd.f32 0.0, %v765
      %v767 = vpop.f32.mrf.mxu0
      %768 = vmatprep.mubr.bf16.mxu0 0
      %769 = vmatmul.mubr.bf16.gmra.mxu0 %v702
      %v770 = vpop.f32.mrf.mxu0
      %v771 = vadd.f32 0.0, %v770
      %v772 = vpop.f32.mrf.mxu0
      %v773 = vpop.f32.mrf.mxu0
      %v774 = vadd.f32 0.0, %v773
      %v775 = vpop.f32.mrf.mxu0
      %776 = vmatprep.mubr.bf16.mxu0 0
      %777 = vmatmul.mubr.bf16.gmra.mxu0 %v704
      %v778 = vpop.f32.mrf.mxu0
      %v779 = vadd.f32 0.0, %v778
      %v780 = vpop.f32.mrf.mxu0
      %v781 = vpop.f32.mrf.mxu0
      %v782 = vadd.f32 0.0, %v781
      %v783 = vpop.f32.mrf.mxu0
      %784 = vmatprep.mubr.bf16.mxu0 0
      %785 = vmatmul.mubr.bf16.gmra.mxu0 %v706
      %v786 = vpop.f32.mrf.mxu0
      %v787 = vadd.f32 0.0, %v786
      %v788 = vpop.f32.mrf.mxu0
      %v789 = vpop.f32.mrf.mxu0
      %v790 = vadd.f32 0.0, %v789
      %v791 = vpop.f32.mrf.mxu0
      %792 = vmatprep.mubr.bf16.mxu0 0
      %793 = vmatmul.mubr.bf16.gmra.mxu0 %v708
      %v794 = vpop.f32.mrf.mxu0
      %v795 = vadd.f32 0.0, %v794
      %v796 = vpop.f32.mrf.mxu0
      %v797 = vpop.f32.mrf.mxu0
      %v798 = vadd.f32 0.0, %v797
      %v799 = vpop.f32.mrf.mxu0
      %800 = vmatprep.mubr.bf16.mxu0 0
      %801 = vmatmul.mubr.bf16.gmra.mxu0 %v710
      %v802 = vpop.f32.mrf.mxu0
      %v803 = vadd.f32 0.0, %v802
      %v804 = vpop.f32.mrf.mxu0
      %v805 = vpop.f32.mrf.mxu0
      %v806 = vadd.f32 0.0, %v805
      %v807 = vpop.f32.mrf.mxu0
      %808 = vdwg.mxu0
      %v809 = vpack.c.bf16 %v750, %v747
      %v810 = vpack.c.bf16 %v758, %v755
      %v811 = vpack.c.bf16 %v766, %v763
      %v812 = vpack.c.bf16 %v774, %v771
      %v813 = vpack.c.bf16 %v782, %v779
      %v814 = vpack.c.bf16 %v790, %v787
      %v815 = vpack.c.bf16 %v798, %v795
      %v816 = vpack.c.bf16 %v806, %v803
      %v825 = vunpack.c.l.b16 %v809
      %v826 = vunpack.c.h.b16 %v809
      %v827 = vunpack.c.l.b16 %v810
      %v828 = vunpack.c.h.b16 %v810
      %v829 = vunpack.c.l.b16 %v811
      %v830 = vunpack.c.h.b16 %v811
      %v831 = vunpack.c.l.b16 %v812
      %v832 = vunpack.c.h.b16 %v812
      %v833 = vunpack.c.l.b16 %v813
      %v834 = vunpack.c.h.b16 %v813
      %v835 = vunpack.c.l.b16 %v814
      %v836 = vunpack.c.h.b16 %v814
      %v837 = vunpack.c.l.b16 %v815
      %v838 = vunpack.c.h.b16 %v815
      %v839 = vunpack.c.l.b16 %v816
      %v840 = vunpack.c.h.b16 %v816
      %v841 = vpack.c.b16 %v825, %v825
      %v842 = vpack.c.b16 %v826, %v826
      %v843 = vpack.c.b16 %v827, %v827
      %v844 = vpack.c.b16 %v828, %v828
      %v845 = vpack.c.b16 %v829, %v829
      %v846 = vpack.c.b16 %v830, %v830
      %v847 = vpack.c.b16 %v831, %v831
      %v848 = vpack.c.b16 %v832, %v832
      %v849 = vpack.c.b16 %v833, %v833
      %v850 = vpack.c.b16 %v834, %v834
      %v851 = vpack.c.b16 %v835, %v835
      %v852 = vpack.c.b16 %v836, %v836
      %v853 = vpack.c.b16 %v837, %v837
      %v854 = vpack.c.b16 %v838, %v838
      %v855 = vpack.c.b16 %v839, %v839
      %v856 = vpack.c.b16 %v840, %v840
      %vm873 = vcmask 257024
      %874 = vst.msk [vmem:[%s363] sm:$0xf] %vm873, %v841
      %875 = vst.msk [vmem:[%s363 + $0x4] sm:$0xf] %vm873, %v842
      %876 = vst.msk [vmem:[%s363 + $0x8] sm:$0xf] %vm873, %v843
      %877 = vst.msk [vmem:[%s363 + $0xc] sm:$0xf] %vm873, %v844
      %878 = vst.msk [vmem:[%s363 + $0x10] sm:$0xf] %vm873, %v845
      %879 = vst.msk [vmem:[%s363 + $0x14] sm:$0xf] %vm873, %v846
      %880 = vst.msk [vmem:[%s363 + $0x18] sm:$0xf] %vm873, %v847
      %881 = vst.msk [vmem:[%s363 + $0x1c] sm:$0xf] %vm873, %v848
      %882 = vst.msk [vmem:[%s363 + $0x20] sm:$0xf] %vm873, %v849
      %883 = vst.msk [vmem:[%s363 + $0x24] sm:$0xf] %vm873, %v850
      %884 = vst.msk [vmem:[%s363 + $0x28] sm:$0xf] %vm873, %v851
      %885 = vst.msk [vmem:[%s363 + $0x2c] sm:$0xf] %vm873, %v852
      %886 = vst.msk [vmem:[%s363 + $0x30] sm:$0xf] %vm873, %v853
      %887 = vst.msk [vmem:[%s363 + $0x34] sm:$0xf] %vm873, %v854
      %888 = vst.msk [vmem:[%s363 + $0x38] sm:$0xf] %vm873, %v855
      %889 = vst.msk [vmem:[%s363 + $0x3c] sm:$0xf] %vm873, %v856
      %890 = vmatprep.subr.mxu0 0.0
      %891 = vmatpush1.msra.mxu0 %v806
      %892 = vmatprep.subr.mxu0 0.0
      %893 = vmatpush1.msra.mxu0 %v803
      %894 = vmatprep.subr.mxu0 0.0
      %895 = vmatpush1.msra.mxu0 %v798
      %896 = vmatprep.subr.mxu0 0.0
      %897 = vmatpush1.msra.mxu0 %v795
      %898 = vmatprep.subr.mxu0 0.0
      %899 = vmatpush1.msra.mxu0 %v790
      %900 = vmatprep.subr.mxu0 0.0
      %901 = vmatpush1.msra.mxu0 %v787
      %902 = vmatprep.subr.mxu0 0.0
      %903 = vmatpush1.msra.mxu0 %v782
      %904 = vmatprep.subr.mxu0 0.0
      %905 = vmatpush1.msra.mxu0 %v779
      %906 = vmatprep.subr.mxu0 0.0
      %907 = vmatpush1.msra.mxu0 %v774
      %908 = vmatprep.subr.mxu0 0.0
      %909 = vmatpush1.msra.mxu0 %v771
      %910 = vmatprep.subr.mxu0 0.0
      %911 = vmatpush1.msra.mxu0 %v766
      %912 = vmatprep.subr.mxu0 0.0
      %913 = vmatpush1.msra.mxu0 %v763
      %914 = vmatprep.subr.mxu0 0.0
      %915 = vmatpush1.msra.mxu0 %v758
      %916 = vmatprep.subr.mxu0 0.0
      %917 = vmatpush1.msra.mxu0 %v755
      %918 = vmatprep.subr.mxu0 0.0
      %919 = vmatpush1.msra.mxu0 %v750
      %920 = vmatprep.subr.mxu0 0.0
      %921 = vmatpush1.msra.mxu0 %v747
      %922 = vmatprep.subr.mxu0 0.0
      %923 = vmatpush2.msra.mxu0 0.0
      %924 = vmatprep.subr.mxu0 0.0
      %925 = vmatpush2.msra.mxu0 0.0
      %926 = vmatprep.subr.mxu0 0.0
      %927 = vmatpush2.msra.mxu0 0.0
      %928 = vmatprep.subr.mxu0 0.0
      %929 = vmatpush2.msra.mxu0 0.0
      %930 = vmatprep.subr.mxu0 0.0
      %931 = vmatpush2.msra.mxu0 0.0
      %932 = vmatprep.subr.mxu0 0.0
      %933 = vmatpush2.msra.mxu0 0.0
      %934 = vmatprep.subr.mxu0 0.0
      %935 = vmatpush2.msra.mxu0 0.0
      %936 = vmatprep.subr.mxu0 0.0
      %937 = vmatpush2.msra.mxu0 0.0
      %938 = vmatprep.subr.mxu0 0.0
      %939 = vmatpush2.msra.mxu0 0.0
      %940 = vmatprep.subr.mxu0 0.0
      %941 = vmatpush2.msra.mxu0 0.0
      %942 = vmatprep.subr.mxu0 0.0
      %943 = vmatpush2.msra.mxu0 0.0
      %944 = vmatprep.subr.mxu0 0.0
      %945 = vmatpush2.msra.mxu0 0.0
      %946 = vmatprep.subr.mxu0 0.0
      %947 = vmatpush2.msra.mxu0 0.0
      %948 = vmatprep.subr.mxu0 0.0
      %949 = vmatpush2.msra.mxu0 0.0
      %950 = vmatprep.subr.mxu0 0.0
      %951 = vmatpush2.msra.mxu0 0.0
      %952 = vmatprep.subr.mxu0 0.0
      %953 = vmatpush2.msra.mxu0 0.0
      %954 = vmatprep.mubr.f32.mxu0 0.0
      %955 = vmatmul.mubr.f32.gmra.mxu0 1.0
      %v956 = vpop.f32.mrf.mxu0
      %v957 = vadd.f32 0.0, %v956
      %v958 = vpop.f32.mrf.mxu0
      %959 = vdwg.mxu0
      %vm960 = vcmask 253952
      %961 = vst.msk [vmem:[%s371] sm:$0x1] %vm960, %v957
      %v962 = vmul.f32 %v747, %v747
      %v963 = vmul.f32 %v750, %v750
      %v964 = vmul.f32 %v755, %v755
      %v965 = vmul.f32 %v758, %v758
      %v966 = vmul.f32 %v763, %v763
      %v967 = vmul.f32 %v766, %v766
      %v968 = vmul.f32 %v771, %v771
      %v969 = vmul.f32 %v774, %v774
      %v970 = vmul.f32 %v779, %v779
      %v971 = vmul.f32 %v782, %v782
      %v972 = vmul.f32 %v787, %v787
      %v973 = vmul.f32 %v790, %v790
      %v974 = vmul.f32 %v795, %v795
      %v975 = vmul.f32 %v798, %v798
      %v976 = vmul.f32 %v803, %v803
      %v977 = vmul.f32 %v806, %v806
      %978 = vmatprep.subr.mxu0 0.0
      %979 = vmatpush1.msra.mxu0 %v977
      %980 = vmatprep.subr.mxu0 0.0
      %981 = vmatpush1.msra.mxu0 %v976
      %982 = vmatprep.subr.mxu0 0.0
      %983 = vmatpush1.msra.mxu0 %v975
      %984 = vmatprep.subr.mxu0 0.0
      %985 = vmatpush1.msra.mxu0 %v974
      %986 = vmatprep.subr.mxu0 0.0
      %987 = vmatpush1.msra.mxu0 %v973
      %988 = vmatprep.subr.mxu0 0.0
      %989 = vmatpush1.msra.mxu0 %v972
      %990 = vmatprep.subr.mxu0 0.0
      %991 = vmatpush1.msra.mxu0 %v971
      %992 = vmatprep.subr.mxu0 0.0
      %993 = vmatpush1.msra.mxu0 %v970
      %994 = vmatprep.subr.mxu0 0.0
      %995 = vmatpush1.msra.mxu0 %v969
      %996 = vmatprep.subr.mxu0 0.0
      %997 = vmatpush1.msra.mxu0 %v968
      %998 = vmatprep.subr.mxu0 0.0
      %999 = vmatpush1.msra.mxu0 %v967
      %1000 = vmatprep.subr.mxu0 0.0
      %1001 = vmatpush1.msra.mxu0 %v966
      %1002 = vmatprep.subr.mxu0 0.0
      %1003 = vmatpush1.msra.mxu0 %v965
      %1004 = vmatprep.subr.mxu0 0.0
      %1005 = vmatpush1.msra.mxu0 %v964
      %1006 = vmatprep.subr.mxu0 0.0
      %1007 = vmatpush1.msra.mxu0 %v963
      %1008 = vmatprep.subr.mxu0 0.0
      %1009 = vmatpush1.msra.mxu0 %v962
      %1010 = vmatprep.subr.mxu0 0.0
      %1011 = vmatpush2.msra.mxu0 0.0
      %1012 = vmatprep.subr.mxu0 0.0
      %1013 = vmatpush2.msra.mxu0 0.0
      %1014 = vmatprep.subr.mxu0 0.0
      %1015 = vmatpush2.msra.mxu0 0.0
      %1016 = vmatprep.subr.mxu0 0.0
      %1017 = vmatpush2.msra.mxu0 0.0
      %1018 = vmatprep.subr.mxu0 0.0
      %1019 = vmatpush2.msra.mxu0 0.0
      %1020 = vmatprep.subr.mxu0 0.0
      %1021 = vmatpush2.msra.mxu0 0.0
      %1022 = vmatprep.subr.mxu0 0.0
      %1023 = vmatpush2.msra.mxu0 0.0
      %1024 = vmatprep.subr.mxu0 0.0
      %1025 = vmatpush2.msra.mxu0 0.0
      %1026 = vmatprep.subr.mxu0 0.0
      %1027 = vmatpush2.msra.mxu0 0.0
      %1028 = vmatprep.subr.mxu0 0.0
      %1029 = vmatpush2.msra.mxu0 0.0
      %1030 = vmatprep.subr.mxu0 0.0
      %1031 = vmatpush2.msra.mxu0 0.0
      %1032 = vmatprep.subr.mxu0 0.0
      %1033 = vmatpush2.msra.mxu0 0.0
      %1034 = vmatprep.subr.mxu0 0.0
      %1035 = vmatpush2.msra.mxu0 0.0
      %1036 = vmatprep.subr.mxu0 0.0
      %1037 = vmatpush2.msra.mxu0 0.0
      %1038 = vmatprep.subr.mxu0 0.0
      %1039 = vmatpush2.msra.mxu0 0.0
      %1040 = vmatprep.subr.mxu0 0.0
      %1041 = vmatpush2.msra.mxu0 0.0
      %1042 = vmatprep.mubr.f32.mxu0 0.0
      %1043 = vmatmul.mubr.f32.gmra.mxu0 1.0
      %v1044 = vpop.f32.mrf.mxu0
      %v1045 = vadd.f32 0.0, %v1044
      %v1046 = vpop.f32.mrf.mxu0
      %1047 = vdwg.mxu0
      %1048 = vst.msk [vmem:[%s378] sm:$0x1] %vm960, %v1045
      %s1049 = smul.u32 8, %s22
      %p1050 = scmp.lt.s32.totalorder %s21, 1
      %s1051 = scalar_select %p1050, %s21, 1
      %p1052 = scmp.lt.s32.totalorder %s1049, 15
      %s1053 = scalar_select %p1052, %s1049, 15
      %s1054 = smul.addr %s1053, 2
      %s1055 = smul.addr %s1051, 32
      %s1056 = sadd.s32 %s1054, %s1055
      %s1057 = smul.addr %s1056, 4
      %s1058 = scalar_lea.vmem %s3, %s1057
      %p1059 = scmp.lt.s32.totalorder %s21, 1
      %s1060 = scalar_select %p1059, %s21, 1
      %p1061 = scmp.lt.s32.totalorder %s22, 1
      %s1062 = scalar_select %p1061, %s22, 1
      %s1063 = smul.addr %s1060, 2
      %s1064 = sadd.s32 %s1062, %s1063
      %s1065 = scalar_lea.vmem %s4, %s1064
      %p1066 = scmp.lt.s32.totalorder %s21, 1
      %s1067 = scalar_select %p1066, %s21, 1
      %p1068 = scmp.lt.s32.totalorder %s22, 1
      %s1069 = scalar_select %p1068, %s22, 1
      %s1070 = smul.addr %s1067, 2
      %s1071 = sadd.s32 %s1069, %s1070
      %s1072 = scalar_lea.vmem %s5, %s1071
      // Predicated region
      $region33: #{up_forward.1} parent=31 // pred_check
        %p1073 = pneg %p130
      $region34: #{up_forward.1} parent=31 // pred_check_branch
        %1075 = sbr.rel (%p1073) target = $region36
      $region35: #{up_forward.1} parent=31 // pred_region
        %s1076 = smul.u32 8, %s22
      $region36: #{up_forward.1} parent=31 // pred_fallthru
        _
      // Predicated region
      $region37: #{up_forward.1} parent=31 // pred_check
        %p1077 = pneg %p158
      $region38: #{up_forward.1} parent=31 // pred_check_branch
        %1079 = sbr.rel (%p1077) target = $region40
      $region39: #{up_forward.1} parent=31 // pred_region
        _
      $region40: #{up_forward.1} parent=31 // pred_fallthru
        _
      // Predicated region
      $region41: #{up_forward.1} parent=31 // pred_check
        %p1080 = pneg %p186
      $region42: #{up_forward.1} parent=31 // pred_check_branch
        %1082 = sbr.rel (%p1080) target = $region44
      $region43: #{up_forward.1} parent=31 // pred_region
        _
      $region44: #{up_forward.1} parent=31 // pred_fallthru
        _
    $region32: #{up_forward.1} parent=5 // pred_fallthru
      _
    %p1083 = scmp.le.s32.totalorder 2, %s12
    // Predicated region
    $region45: #{up_forward.1} parent=5 // pred_check
      %p1084 = pneg %p1083
    $region46: #{up_forward.1} parent=5 // pred_check_branch
      %1086 = sbr.rel (%p1084) target = $region48
    $region47: #{up_forward.1} parent=5 // pred_region
      %s1087 = ssub.s32 %s12, 2
      // Predicated region
      $region49: #{up_forward.1} parent=47 // pred_check
        %p1088 = pneg %p136
      $region50: #{up_forward.1} parent=47 // pred_check_branch
        %1090 = sbr.rel (%p1088) target = $region52
      $region51: #{up_forward.1} parent=47 // pred_region
        %s1091 = smul.u32 8, %s24
        %p1092 = scmp.lt.s32.totalorder %s23, 1
        %s1093 = scalar_select %p1092, %s23, 1
        %p1094 = scmp.lt.s32.totalorder %s1091, 15
        %s1095 = scalar_select %p1094, %s1091, 15
        %s1096 = smul.addr %s1095, 2
        %s1097 = smul.addr %s1093, 32
        %s1098 = sadd.s32 %s1096, %s1097
        %s1099 = smul.addr %s1098, 4
        %s1100 = scalar_lea.vmem %s3, %s1099
      $region52: #{up_forward.1} parent=47 // pred_fallthru
        _
      // Predicated region
      $region53: #{up_forward.1} parent=47 // pred_check
        %p1101 = pneg %p164
      $region54: #{up_forward.1} parent=47 // pred_check_branch
        %1103 = sbr.rel (%p1101) target = $region56
      $region55: #{up_forward.1} parent=47 // pred_region
        %p1104 = scmp.lt.s32.totalorder %s23, 1
        %s1105 = scalar_select %p1104, %s23, 1
        %p1106 = scmp.lt.s32.totalorder %s24, 1
        %s1107 = scalar_select %p1106, %s24, 1
        %s1108 = smul.addr %s1105, 2
        %s1109 = sadd.s32 %s1107, %s1108
        %s1110 = scalar_lea.vmem %s4, %s1109
      $region56: #{up_forward.1} parent=47 // pred_fallthru
        _
      // Predicated region
      $region57: #{up_forward.1} parent=47 // pred_check
        %p1111 = pneg %p192
      $region58: #{up_forward.1} parent=47 // pred_check_branch
        %1113 = sbr.rel (%p1111) target = $region60
      $region59: #{up_forward.1} parent=47 // pred_region
        %p1114 = scmp.lt.s32.totalorder %s23, 1
        %s1115 = scalar_select %p1114, %s23, 1
        %p1116 = scmp.lt.s32.totalorder %s24, 1
        %s1117 = scalar_select %p1116, %s24, 1
        %s1118 = smul.addr %s1115, 2
        %s1119 = sadd.s32 %s1117, %s1118
        %s1120 = scalar_lea.vmem %s5, %s1119
      $region60: #{up_forward.1} parent=47 // pred_fallthru
        _
    $region48: #{up_forward.1} parent=5 // pred_fallthru
      _
  $region6: #{up_forward.1} parent=0 // loop_footer
    %s16 = sadd.s32 1, %s12
  $region7: #{up_forward.1} parent=0 // loop_footer_branch
    %11 = sbr.rel target = $region3
  $region8: #{up_forward.1} parent=0 // loop_exit
    _

</llo_original>
